<compile_context>
chip_gen: v7x
topology: tpu7x:2x2x1
jax: 0.10.0
libtpu: 0.0.40
codegen_flags: <defaults>
</compile_context>

<pallas_src>
import functools

import jax
import jax.numpy as jnp
from jax.experimental import pallas as pl
from jax.experimental.pallas import tpu as pltpu

H, W, HW = 3, 3, 9
CIN, COUT = 16, 2
NFEAT_IN = CIN * HW          # 144  (flattened NCHW input features: c*9 + h*3 + w)
FEAT = COUT * HW             # 18   (PyTorch view(-1, 18) features: o*9 + h*3 + w)
NOUT = 4
BN_EPS = 1e-5


# ----------------------------- fused kernel -------------------------------- #

def policy_head_kernel(x_ref, wconv_ref, pool_ref, bn_g_ref, bn_b_ref,
                       wfc_ref, bfc_ref, o_ref,
                       y_ref, stats_ref, ss_ref, *, inv_n):
    # x_ref:     [tile, 144] bf16   flattened NCHW input tile
    # wconv_ref: [144, 18]   bf16   kron-expanded 1x1 conv weight
    # pool_ref:  [18, 18]    f32    block one-hot channel pooling matrix
    # bn_g_ref:  [1, 18]     f32    gamma broadcast per-feature
    # bn_b_ref:  [1, 18]     f32    beta broadcast per-feature
    # wfc_ref:   [18, 4]     bf16   fc weight (transposed on host)
    # bfc_ref:   [1, 4]      f32    fc bias
    # o_ref:     [tile, 4]   f32    output tile (written in phase 1 only)
    # y_ref:     [B_pad, 18] f32    persistent VMEM cache of conv outputs
    # stats_ref: [8, 18]     f32    rows 0/1 = accumulated col_sum / col_sq
    # ss_ref:    [8, 18]     f32    rows 0/1 = BN scale / shift
    phase = pl.program_id(0)
    i = pl.program_id(1)
    tile = x_ref.shape[0]
    row0 = pl.multiple_of(i * tile, 8)

    # -------- phase 0: conv matmul, cache y, accumulate BN statistics ------ #
    @pl.when(phase == 0)
    def _():
        @pl.when(i == 0)
        def _():
            stats_ref[...] = jnp.zeros_like(stats_ref)

        y = jnp.dot(x_ref[...], wconv_ref[...],
                    preferred_element_type=jnp.float32)              # [tile, 18] f32
        y_ref[pl.ds(row0, tile), :] = y                              # VMEM cache
        stats_ref[0:1, :] += jnp.sum(y, axis=0, keepdims=True)       # col_sum
        stats_ref[1:2, :] += jnp.sum(y * y, axis=0, keepdims=True)   # col_sumsq

    # -------- phase 1: finalize BN once, then affine + ReLU + FC ----------- #
    @pl.when(phase == 1)
    def _():
        @pl.when(i == 0)
        def _():
            # Single stacked pool matmul: [8,18] (rows 0/1 live) @ [18,18].
            pooled = jnp.dot(stats_ref[...], pool_ref[...],
                             preferred_element_type=jnp.float32) * inv_n
            mean_f = pooled[0:1, :]                                  # [1, 18]
            var_f = jnp.maximum(pooled[1:2, :] - mean_f * mean_f, 0.0)
            scale_f = bn_g_ref[...] * jax.lax.rsqrt(var_f + BN_EPS)
            shift_f = bn_b_ref[...] - mean_f * scale_f
            ss_ref[0:1, :] = scale_f
            ss_ref[1:2, :] = shift_f

        y = y_ref[pl.ds(row0, tile), :]                              # [tile, 18] f32
        z = jnp.maximum(y * ss_ref[0:1, :] + ss_ref[1:2, :], 0.0)    # BN + ReLU
        o_ref[...] = (jnp.dot(z.astype(wfc_ref.dtype), wfc_ref[...],
                              preferred_element_type=jnp.float32)
                      + bfc_ref[...])                                # [tile, 4]


# ------------------------------- wrapper ------------------------------------ #

def _round_up(n, m):
    return ((n + m - 1) // m) * m


def policy_head(x, kparams, *, tile_rows=4096):
    """x: [B, 16, 3, 3] float32 (NCHW).  Returns [B, 4] float32."""
    B = x.shape[0]
    assert x.shape[1:] == (CIN, H, W)
    # Free reshape (no transpose); cast the dominant HBM stream to bf16.
    x2 = x.reshape(B, NFEAT_IN).astype(jnp.bfloat16)

    tile = min(_round_up(B, 8), _round_up(tile_rows, 8))
    B_pad = _round_up(B, tile)
    if B_pad != B:
        # Zero rows contribute exactly 0 to col_sum / col_sq (no conv bias in
        # the kernel), so BN statistics with inv_n = 1/(B*9) remain exact.
        x2 = jnp.pad(x2, ((0, B_pad - B), (0, 0)))
    n_tiles = B_pad // tile

    kernel = functools.partial(policy_head_kernel, inv_n=1.0 / float(B * HW))

    # VMEM budget: y cache (lane-padded) + double-buffered x/out tiles + slack.
    vmem_est = (B_pad * 128 * 4                # y cache, lanes padded 18 -> 128
                + 2 * tile * NFEAT_IN * 2      # x double buffer (bf16)
                + 2 * tile * 128 * 4           # out double buffer (lane-padded)
                + (2 << 20))                   # weights / stats / slack
    vmem_limit = int(min(max(vmem_est, 32 << 20), 120 << 20))

    cost = pl.CostEstimate(
        flops=2 * B_pad * NFEAT_IN * FEAT + 2 * B_pad * FEAT * NOUT,
        transcendentals=FEAT,
        bytes_accessed=B_pad * (NFEAT_IN * 2 + NOUT * 4)
        + (NFEAT_IN * FEAT + FEAT * FEAT + FEAT * NOUT) * 2
        + 4 * FEAT * 4,
    )

    grid_spec = pltpu.PrefetchScalarGridSpec(
        num_scalar_prefetch=0,
        grid=(2, n_tiles),                                  # (phase, row tile)
        in_specs=[
            # phase 0 walks the row tiles; phase 1 pins to tile 0 (no re-read).
            pl.BlockSpec((tile, NFEAT_IN), lambda p, i: (i * (1 - p), 0)),
            pl.BlockSpec((NFEAT_IN, FEAT), lambda p, i: (0, 0)),
            pl.BlockSpec((FEAT, FEAT), lambda p, i: (0, 0)),
            pl.BlockSpec((1, FEAT), lambda p, i: (0, 0)),
            pl.BlockSpec((1, FEAT), lambda p, i: (0, 0)),
            pl.BlockSpec((FEAT, NOUT), lambda p, i: (0, 0)),
            pl.BlockSpec((1, NOUT), lambda p, i: (0, 0)),
        ],
        # Output blocks only advance in phase 1 (accumulator-style index map).
        out_specs=pl.BlockSpec((tile, NOUT), lambda p, i: (i * p, 0)),
        scratch_shapes=[
            pltpu.VMEM((B_pad, FEAT), jnp.float32),         # y cache
            pltpu.VMEM((8, FEAT), jnp.float32),             # col_sum / col_sq
            pltpu.VMEM((8, FEAT), jnp.float32),             # BN scale / shift
        ],
    )

    out = pl.pallas_call(
        kernel,
        out_shape=jax.ShapeDtypeStruct((B_pad, NOUT), jnp.float32),
        grid_spec=grid_spec,
        compiler_params=pltpu.CompilerParams(
            dimension_semantics=("arbitrary", "arbitrary"),
            vmem_limit_bytes=vmem_limit),
        cost_estimate=cost,
    )(x2, kparams["conv_w_big"], kparams["pool"],
      kparams["bn_g_f"], kparams["bn_b_f"], kparams["fc_w_t"], kparams["fc_b"])
    return out[:B]


# ------------------------------- params ------------------------------------- #

def init_params(key):
    """Parameters in PyTorch-native layouts (PyTorch default init)."""
    k1, k2, k3, k4 = jax.random.split(key, 4)
    conv_bound = 1.0 / jnp.sqrt(float(CIN))     # Conv2d default init range
    fc_bound = 1.0 / jnp.sqrt(float(FEAT))      # Linear default init range
    return {
        "conv_w": jax.random.uniform(k1, (COUT, CIN), jnp.float32,
                                     -conv_bound, conv_bound),
        # conv bias is mathematically cancelled by train-mode BN's batch-mean
        # subtraction; kept only for parity with the PyTorch parameter set.
        "conv_b": jax.random.uniform(k2, (COUT,), jnp.float32,
                                     -conv_bound, conv_bound),
        "bn_g": jnp.ones((COUT,), jnp.float32),
        "bn_b": jnp.zeros((COUT,), jnp.float32),
        "fc_w": jax.random.uniform(k3, (NOUT, FEAT), jnp.float32,
                                   -fc_bound, fc_bound),
        "fc_b": jax.random.uniform(k4, (NOUT,), jnp.float32,
                                   -fc_bound, fc_bound),
    }


def prepare_params(params):
    """One-time host-side repack into kernel layouts (no per-call cost)."""
    conv_w = params["conv_w"]                                    # [2, 16]
    # Expand the 1x1 conv to a linear map over flattened NCHW features:
    #   W_big[c*9+p, o*9+q] = conv_w[o, c] * (p == q)
    w_big = jnp.kron(conv_w.T, jnp.eye(HW, dtype=conv_w.dtype))  # [144, 18]
    feat_chan = jnp.arange(FEAT) // HW
    pool = (feat_chan[:, None] == feat_chan[None, :]).astype(jnp.float32)
    return {
        "conv_w_big": w_big.astype(jnp.bfloat16),
        "pool": pool,
        "bn_g_f": jnp.repeat(params["bn_g"], HW).reshape(1, FEAT),
        "bn_b_f": jnp.repeat(params["bn_b"], HW).reshape(1, FEAT),
        "fc_w_t": params["fc_w"].T.astype(jnp.bfloat16),         # [18, 4]
        "fc_b": params["fc_b"].reshape(1, NOUT),
    }


# --------------------------------- main -------------------------------------- #

if __name__ == "__main__":
    key = jax.random.PRNGKey(0)
    k_x, k_p = jax.random.split(key)
    # Forward implies B x 16 x 3 x 3 (fc expects 2*3*3 features after the conv).
    x = jax.random.normal(k_x, (2, CIN, H, W), jnp.float32)
    params = init_params(k_p)
    kparams = prepare_params(params)

    out = jax.jit(policy_head)(x, kparams)
    jax.block_until_ready(out)
    assert out.shape == (2, NOUT) and out.dtype == jnp.float32
    print("KERNEL_OK")
</pallas_src>

<mosaic_0001>
module attributes {stable_mosaic.version = 11 : i64} {
  func.func @policy_head_kernel(%arg0: i32, %arg1: i32, %arg2: memref<8x144xbf16, #tpu.memory_space<vmem>>, %arg3: memref<144x18xbf16, #tpu.memory_space<vmem>>, %arg4: memref<18x18xf32, #tpu.memory_space<vmem>>, %arg5: memref<1x18xf32, #tpu.memory_space<vmem>>, %arg6: memref<1x18xf32, #tpu.memory_space<vmem>>, %arg7: memref<18x4xbf16, #tpu.memory_space<vmem>>, %arg8: memref<1x4xf32, #tpu.memory_space<vmem>>, %arg9: memref<8x4xf32, #tpu.memory_space<vmem>>, %arg10: memref<8x18xf32, #tpu.memory_space<vmem>>, %arg11: memref<8x18xf32, #tpu.memory_space<vmem>>, %arg12: memref<8x18xf32, #tpu.memory_space<vmem>>) attributes {dimension_semantics = [#tpu.dimension_semantics<arbitrary>, #tpu.dimension_semantics<arbitrary>], iteration_bounds = array<i64: 2, 1>, scalar_prefetch = 0 : i64, scratch_operands = 3 : i64, tpu.core_type = #tpu.core_type<tc>, window_params = [{transform_indices = @transform_0, window_bounds = array<i64: 8, 144>}, {pipeline_mode = #tpu.pipeline_mode<synchronous>, transform_indices = @transform_1, window_bounds = array<i64: 144, 18>}, {pipeline_mode = #tpu.pipeline_mode<synchronous>, transform_indices = @transform_2, window_bounds = array<i64: 18, 18>}, {pipeline_mode = #tpu.pipeline_mode<synchronous>, transform_indices = @transform_3, window_bounds = array<i64: 1, 18>}, {pipeline_mode = #tpu.pipeline_mode<synchronous>, transform_indices = @transform_4, window_bounds = array<i64: 1, 18>}, {pipeline_mode = #tpu.pipeline_mode<synchronous>, transform_indices = @transform_5, window_bounds = array<i64: 18, 4>}, {pipeline_mode = #tpu.pipeline_mode<synchronous>, transform_indices = @transform_6, window_bounds = array<i64: 1, 4>}, {transform_indices = @transform_7, window_bounds = array<i64: 8, 4>}]} {
    %c8_i32 = arith.constant 8 : i32
    %0 = arith.muli %arg1, %c8_i32 : i32
    %1 = tpu.assume_multiple %0, 8 : i32
    %c0_i32 = arith.constant 0 : i32
    %2 = arith.cmpi eq, %arg0, %c0_i32 : i32
    %3 = arith.extui %2 : i1 to i32
    %c0_i32_0 = arith.constant 0 : i32
    %4 = arith.cmpi ne, %3, %c0_i32_0 : i32
    scf.if %4 {
      %c0_i32_2 = arith.constant 0 : i32
      %8 = arith.cmpi eq, %arg1, %c0_i32_2 : i32
      %9 = arith.extui %8 : i1 to i32
      %c0_i32_3 = arith.constant 0 : i32
      %10 = arith.cmpi ne, %9, %c0_i32_3 : i32
      scf.if %10 {
        %cst_17 = arith.constant 0.000000e+00 : f32
        %27 = vector.broadcast %cst_17 : f32 to vector<8x18xf32>
        %c0_18 = arith.constant 0 : index
        %c0_19 = arith.constant 0 : index
        %28 = vector.load %arg11[%c0_18, %c0_19] : memref<8x18xf32, #tpu.memory_space<vmem>>, vector<8x18xf32>
        tpu.vector_store %arg11[%c0_18, %c0_19], %27 {strides = array<i32>} : memref<8x18xf32, #tpu.memory_space<vmem>>, vector<8x18xf32>,
      } else {
      }
      %c0 = arith.constant 0 : index
      %c0_4 = arith.constant 0 : index
      %11 = vector.load %arg2[%c0, %c0_4] : memref<8x144xbf16, #tpu.memory_space<vmem>>, vector<8x144xbf16>
      %c0_5 = arith.constant 0 : index
      %c0_6 = arith.constant 0 : index
      %12 = vector.load %arg3[%c0_5, %c0_6] : memref<144x18xbf16, #tpu.memory_space<vmem>>, vector<144x18xbf16>
      %cst = arith.constant dense<0.000000e+00> : vector<8x18xf32>
      %13 = tpu.matmul %11, %12, %cst {dimension_numbers = #tpu.dot_dimension_numbers<[1], [0], [0], [1], [0, 0, 1, 1], [], []>} : vector<8x144xbf16>, vector<144x18xbf16>, vector<8x18xf32> -> vector<8x18xf32>
      %14 = arith.index_cast %1 : i32 to index
      %c0_7 = arith.constant 0 : index
      %15 = vector.load %arg10[%14, %c0_7] : memref<8x18xf32, #tpu.memory_space<vmem>>, vector<8x18xf32>
      tpu.vector_store %arg10[%14, %c0_7], %13 {strides = array<i32>} : memref<8x18xf32, #tpu.memory_space<vmem>>, vector<8x18xf32>,
      %c0_8 = arith.constant 0 : index
      %c0_9 = arith.constant 0 : index
      %16 = vector.load %arg11[%c0_8, %c0_9] : memref<8x18xf32, #tpu.memory_space<vmem>>, vector<1x18xf32>
      %cst_10 = arith.constant dense<0.000000e+00> : vector<18xf32>
      %17 = vector.multi_reduction <add>, %13, %cst_10 [0] : vector<8x18xf32> to vector<18xf32>
      %18 = vector.shape_cast %17 : vector<18xf32> to vector<1x18xf32>
      %19 = arith.addf %16, %18 : vector<1x18xf32>
      %c0_11 = arith.constant 0 : index
      %c0_12 = arith.constant 0 : index
      %20 = vector.load %arg11[%c0_11, %c0_12] : memref<8x18xf32, #tpu.memory_space<vmem>>, vector<1x18xf32>
      tpu.vector_store %arg11[%c0_11, %c0_12], %19 {strides = array<i32>} : memref<8x18xf32, #tpu.memory_space<vmem>>, vector<1x18xf32>,
      %c1 = arith.constant 1 : index
      %c0_13 = arith.constant 0 : index
      %21 = vector.load %arg11[%c1, %c0_13] : memref<8x18xf32, #tpu.memory_space<vmem>>, vector<1x18xf32>
      %22 = arith.mulf %13, %13 : vector<8x18xf32>
      %cst_14 = arith.constant dense<0.000000e+00> : vector<18xf32>
      %23 = vector.multi_reduction <add>, %22, %cst_14 [0] : vector<8x18xf32> to vector<18xf32>
      %24 = vector.shape_cast %23 : vector<18xf32> to vector<1x18xf32>
      %25 = arith.addf %21, %24 : vector<1x18xf32>
      %c1_15 = arith.constant 1 : index
      %c0_16 = arith.constant 0 : index
      %26 = vector.load %arg11[%c1_15, %c0_16] : memref<8x18xf32, #tpu.memory_space<vmem>>, vector<1x18xf32>
      tpu.vector_store %arg11[%c1_15, %c0_16], %25 {strides = array<i32>} : memref<8x18xf32, #tpu.memory_space<vmem>>, vector<1x18xf32>,
    } else {
    }
    %c1_i32 = arith.constant 1 : i32
    %5 = arith.cmpi eq, %arg0, %c1_i32 : i32
    %6 = arith.extui %5 : i1 to i32
    %c0_i32_1 = arith.constant 0 : i32
    %7 = arith.cmpi ne, %6, %c0_i32_1 : i32
    scf.if %7 {
      %c0_i32_2 = arith.constant 0 : i32
      %8 = arith.cmpi eq, %arg1, %c0_i32_2 : i32
      %9 = arith.extui %8 : i1 to i32
      %c0_i32_3 = arith.constant 0 : i32
      %10 = arith.cmpi ne, %9, %c0_i32_3 : i32
      scf.if %10 {
        %c0_14 = arith.constant 0 : index
        %c0_15 = arith.constant 0 : index
        %28 = vector.load %arg11[%c0_14, %c0_15] : memref<8x18xf32, #tpu.memory_space<vmem>>, vector<8x18xf32>
        %c0_16 = arith.constant 0 : index
        %c0_17 = arith.constant 0 : index
        %29 = vector.load %arg4[%c0_16, %c0_17] : memref<18x18xf32, #tpu.memory_space<vmem>>, vector<18x18xf32>
        %cst_18 = arith.constant dense<0.000000e+00> : vector<8x18xf32>
        %30 = tpu.matmul %28, %29, %cst_18 {dimension_numbers = #tpu.dot_dimension_numbers<[1], [0], [0], [1], [0, 0, 1, 1], [], []>} : vector<8x18xf32>, vector<18x18xf32>, vector<8x18xf32> -> vector<8x18xf32>
        %cst_19 = arith.constant 0.055555556 : f32
        %31 = vector.broadcast %cst_19 : f32 to vector<8x18xf32>
        %32 = arith.mulf %30, %31 : vector<8x18xf32>
        %33 = vector.extract_strided_slice %32 {offsets = [0, 0], sizes = [1, 18], strides = [1, 1]} : vector<8x18xf32> to vector<1x18xf32>
        %34 = vector.extract_strided_slice %32 {offsets = [1, 0], sizes = [1, 18], strides = [1, 1]} : vector<8x18xf32> to vector<1x18xf32>
        %35 = arith.mulf %33, %33 : vector<1x18xf32>
        %36 = arith.subf %34, %35 : vector<1x18xf32>
        %cst_20 = arith.constant 0.000000e+00 : f32
        %37 = vector.broadcast %cst_20 : f32 to vector<1x18xf32>
        %38 = arith.maximumf %36, %37 : vector<1x18xf32>
        %c0_21 = arith.constant 0 : index
        %c0_22 = arith.constant 0 : index
        %39 = vector.load %arg5[%c0_21, %c0_22] : memref<1x18xf32, #tpu.memory_space<vmem>>, vector<1x18xf32>
        %cst_23 = arith.constant 9.99999974E-6 : f32
        %40 = vector.broadcast %cst_23 : f32 to vector<1x18xf32>
        %41 = arith.addf %38, %40 : vector<1x18xf32>
        %42 = math.rsqrt %41 : vector<1x18xf32>
        %43 = arith.mulf %39, %42 : vector<1x18xf32>
        %c0_24 = arith.constant 0 : index
        %c0_25 = arith.constant 0 : index
        %44 = vector.load %arg6[%c0_24, %c0_25] : memref<1x18xf32, #tpu.memory_space<vmem>>, vector<1x18xf32>
        %45 = arith.mulf %33, %43 : vector<1x18xf32>
        %46 = arith.subf %44, %45 : vector<1x18xf32>
        %c0_26 = arith.constant 0 : index
        %c0_27 = arith.constant 0 : index
        %47 = vector.load %arg12[%c0_26, %c0_27] : memref<8x18xf32, #tpu.memory_space<vmem>>, vector<1x18xf32>
        tpu.vector_store %arg12[%c0_26, %c0_27], %43 {strides = array<i32>} : memref<8x18xf32, #tpu.memory_space<vmem>>, vector<1x18xf32>,
        %c1_28 = arith.constant 1 : index
        %c0_29 = arith.constant 0 : index
        %48 = vector.load %arg12[%c1_28, %c0_29] : memref<8x18xf32, #tpu.memory_space<vmem>>, vector<1x18xf32>
        tpu.vector_store %arg12[%c1_28, %c0_29], %46 {strides = array<i32>} : memref<8x18xf32, #tpu.memory_space<vmem>>, vector<1x18xf32>,
      } else {
      }
      %11 = arith.index_cast %1 : i32 to index
      %c0 = arith.constant 0 : index
      %12 = vector.load %arg10[%11, %c0] : memref<8x18xf32, #tpu.memory_space<vmem>>, vector<8x18xf32>
      %c0_4 = arith.constant 0 : index
      %c0_5 = arith.constant 0 : index
      %13 = vector.load %arg12[%c0_4, %c0_5] : memref<8x18xf32, #tpu.memory_space<vmem>>, vector<1x18xf32>
      %14 = vector.broadcast %13 : vector<1x18xf32> to vector<8x18xf32>
      %15 = arith.mulf %12, %14 : vector<8x18xf32>
      %c1 = arith.constant 1 : index
      %c0_6 = arith.constant 0 : index
      %16 = vector.load %arg12[%c1, %c0_6] : memref<8x18xf32, #tpu.memory_space<vmem>>, vector<1x18xf32>
      %17 = vector.broadcast %16 : vector<1x18xf32> to vector<8x18xf32>
      %18 = arith.addf %15, %17 : vector<8x18xf32>
      %cst = arith.constant 0.000000e+00 : f32
      %19 = vector.broadcast %cst : f32 to vector<8x18xf32>
      %20 = arith.maximumf %18, %19 : vector<8x18xf32>
      %21 = arith.truncf %20 : vector<8x18xf32> to vector<8x18xbf16>
      %c0_7 = arith.constant 0 : index
      %c0_8 = arith.constant 0 : index
      %22 = vector.load %arg7[%c0_7, %c0_8] : memref<18x4xbf16, #tpu.memory_space<vmem>>, vector<18x4xbf16>
      %cst_9 = arith.constant dense<0.000000e+00> : vector<8x4xf32>
      %23 = tpu.matmul %21, %22, %cst_9 {dimension_numbers = #tpu.dot_dimension_numbers<[1], [0], [0], [1], [0, 0, 1, 1], [], []>} : vector<8x18xbf16>, vector<18x4xbf16>, vector<8x4xf32> -> vector<8x4xf32>
      %c0_10 = arith.constant 0 : index
      %c0_11 = arith.constant 0 : index
      %24 = vector.load %arg8[%c0_10, %c0_11] : memref<1x4xf32, #tpu.memory_space<vmem>>, vector<1x4xf32>
      %25 = vector.broadcast %24 : vector<1x4xf32> to vector<8x4xf32>
      %26 = arith.addf %23, %25 : vector<8x4xf32>
      %c0_12 = arith.constant 0 : index
      %c0_13 = arith.constant 0 : index
      %27 = vector.load %arg9[%c0_12, %c0_13] : memref<8x4xf32, #tpu.memory_space<vmem>>, vector<8x4xf32>
      tpu.vector_store %arg9[%c0_12, %c0_13], %26 {strides = array<i32>} : memref<8x4xf32, #tpu.memory_space<vmem>>, vector<8x4xf32>,
    } else {
    }
    return
  }
  func.func @transform_0(%arg0: i32, %arg1: i32) -> (i32, i32) {
    %c1_i32 = arith.constant 1 : i32
    %0 = arith.subi %c1_i32, %arg0 : i32
    %1 = arith.muli %arg1, %0 : i32
    %c0_i32 = arith.constant 0 : i32
    %c0_i32_0 = arith.constant 0 : i32
    return %1, %c0_i32 : i32, i32
  }
  func.func @transform_1(%arg0: i32, %arg1: i32) -> (i32, i32) {
    %c0_i32 = arith.constant 0 : i32
    %c0_i32_0 = arith.constant 0 : i32
    %c0_i32_1 = arith.constant 0 : i32
    return %c0_i32, %c0_i32_0 : i32, i32
  }
  func.func @transform_2(%arg0: i32, %arg1: i32) -> (i32, i32) {
    %c0_i32 = arith.constant 0 : i32
    %c0_i32_0 = arith.constant 0 : i32
    %c0_i32_1 = arith.constant 0 : i32
    return %c0_i32, %c0_i32_0 : i32, i32
  }
  func.func @transform_3(%arg0: i32, %arg1: i32) -> (i32, i32) {
    %c0_i32 = arith.constant 0 : i32
    %c0_i32_0 = arith.constant 0 : i32
    %c0_i32_1 = arith.constant 0 : i32
    return %c0_i32, %c0_i32_0 : i32, i32
  }
  func.func @transform_4(%arg0: i32, %arg1: i32) -> (i32, i32) {
    %c0_i32 = arith.constant 0 : i32
    %c0_i32_0 = arith.constant 0 : i32
    %c0_i32_1 = arith.constant 0 : i32
    return %c0_i32, %c0_i32_0 : i32, i32
  }
  func.func @transform_5(%arg0: i32, %arg1: i32) -> (i32, i32) {
    %c0_i32 = arith.constant 0 : i32
    %c0_i32_0 = arith.constant 0 : i32
    %c0_i32_1 = arith.constant 0 : i32
    return %c0_i32, %c0_i32_0 : i32, i32
  }
  func.func @transform_6(%arg0: i32, %arg1: i32) -> (i32, i32) {
    %c0_i32 = arith.constant 0 : i32
    %c0_i32_0 = arith.constant 0 : i32
    %c0_i32_1 = arith.constant 0 : i32
    return %c0_i32, %c0_i32_0 : i32, i32
  }
  func.func @transform_7(%arg0: i32, %arg1: i32) -> (i32, i32) {
    %0 = arith.muli %arg1, %arg0 : i32
    %c0_i32 = arith.constant 0 : i32
    %c0_i32_0 = arith.constant 0 : i32
    return %0, %c0_i32 : i32, i32
  }
}

</mosaic_0001>

<llo_original>
// kernel: policy_head.1
$region0: #{policy_head.1}
  #allocation0 [shape = 'u32[]', space=smem, size = 0x4, offset = 0x4, fixed_abs, tag = 'smem constant byte address 0x4 - core index']
  #allocation1 [shape = 'u32[144,128]{1,0:T(1,128)}', space=vmem, size = 0x12000, scoped, tag = 'internal scratch']
  #allocation2 [shape = 'f32[8,18]{1,0:T(8,128)}', space=vmem, size = 0x1000, scoped, tag = 'scratch operand']
  #allocation3 [shape = 'f32[8,18]{1,0:T(8,128)}', space=vmem, size = 0x1000, scoped, tag = 'scratch operand']
  #allocation4 [shape = 'f32[8,18]{1,0:T(8,128)}', space=vmem, size = 0x1000, scoped, tag = 'scratch operand']
  %s0 = inlined_call_operand.vmem [shape: bf16[8,144], index: 0, kind: input, shape index: {}]
  %s1 = inlined_call_operand.vmem [shape: bf16[144,18], index: 1, kind: input, shape index: {}]
  %s2 = inlined_call_operand.vmem [shape: f32[18,18], index: 2, kind: input, shape index: {}]
  %s3 = inlined_call_operand.vmem [shape: f32[1,18], index: 3, kind: input, shape index: {}]
  %s4 = inlined_call_operand.vmem [shape: f32[1,18], index: 4, kind: input, shape index: {}]
  %s5 = inlined_call_operand.vmem [shape: bf16[18,4], index: 5, kind: input, shape index: {}]
  %s6 = inlined_call_operand.vmem [shape: f32[1,4], index: 6, kind: input, shape index: {}]
  %s7 = inlined_call_operand.vmem [shape: f32[8,4], index: 7, kind: output, shape index: {}]
  %s8 = sld [smem:[#allocation0]]
  $region77: #{policy_head.1} parent=0
    _
  %s10 = ssub.s32 1, %s8
  %s11 = scalar_select 0, %s10, %s8
  loop: start=0, step=1, limit=4
  $region2: #{policy_head.1} parent=0 // loop_pre_header
    _
  $region3: #{policy_head.1} parent=0 // loop_header
    %s13 = sphi 0, %s17
    %p14 = scmp.ge.s32.totalorder %s13, 4
    %s20 = sphi 0, %s32
    %s21 = sphi 0, %s28
    %s22 = sphi 0, %s20
    %s23 = sphi 0, %s21
    %s24 = sphi 0, %s22
    %s25 = sphi 0, %s23
    %s39 = sphi 0, %s41
    %s42 = sphi 0, %s39
    %s43 = sphi 0, %s42
    %s59 = sphi 0, %s43
    %s63 = sphi 0, %s63
    %s65 = sphi 0, %s63
    %s66 = sphi 0, %s65
    %s80 = sphi 0, %s66
    %s84 = sphi 0, %s84
    %s86 = sphi 0, %s84
    %s87 = sphi 0, %s86
    %s101 = sphi 0, %s87
    %s105 = sphi 0, %s105
    %s107 = sphi 0, %s105
    %s108 = sphi 0, %s107
    %s122 = sphi 0, %s108
    %s126 = sphi 0, %s126
    %s128 = sphi 0, %s126
    %s129 = sphi 0, %s128
    %s143 = sphi 0, %s129
    %s147 = sphi 0, %s147
    %s149 = sphi 0, %s147
    %s150 = sphi 0, %s149
    %s164 = sphi 0, %s150
    %s168 = sphi 0, %s168
    %s170 = sphi 0, %s168
    %s171 = sphi 0, %s170
    %s185 = sphi 0, %s171
    %s193 = sphi 0, %s195
    %s196 = sphi 0, %s193
    %s197 = sphi 0, %s196
    %s213 = sphi 0, %s197
  $region4: #{policy_head.1} parent=0 // loop_header_branch
    %16 = sbr.rel (%p14) target = $region8
  $region5: #{policy_head.1} parent=0 // loop_body
    %s18 = ssub.s32 %s13, 1
    %s19 = ssub.s32 %s13, 2
    %s26 = sadd.s32 1, %s21
    %p27 = scmp.ge.s32.totalorder %s26, 1
    %s28 = scalar_select %p27, 0, %s26
    %s29 = sadd.s32 1, %s20
    %s30 = scalar_select %p27, %s29, %s20
    %p31 = scmp.ge.s32.totalorder %s30, 2
    %s32 = scalar_select %p31, 0, %s30
    %s33 = ssub.s32 1, %s20
    %s34 = smul.u32 %s21, %s33
    %s35 = ssub.s32 1, %s32
    %s36 = smul.u32 %s28, %s35
    %s37 = ssub.s32 %s34, %s36
    %p38 = scmp.eq.s32.totalorder %s37, 0
    %s40 = sadd.s32 %s39, 1
    %s41 = scalar_select %p38, %s39, %s40
    %p44 = pneg %p38
    %p45 = scmp.eq.s32.totalorder %s13, 1
    %p46 = por %p44, %p45
    %p47 = scmp.ne.s32.totalorder %s39, %s42
    %p48 = scmp.eq.s32.totalorder %s13, 0
    %p49 = por %p47, %p48
    %p50 = scmp.ne.s32.totalorder %s39, %s42
    %p51 = scmp.eq.s32.totalorder %s18, 1
    %p52 = por %p50, %p51
    %p53 = scmp.ne.s32.totalorder %s42, %s43
    %p54 = scmp.eq.s32.totalorder %s18, 0
    %p55 = por %p53, %p54
    %p56 = scmp.ne.s32.totalorder %s42, %s43
    %p57 = scmp.eq.s32.totalorder %s19, 1
    %p58 = por %p56, %p57
    %p60 = scmp.ne.s32.totalorder %s43, %s59
    %p61 = scmp.eq.s32.totalorder %s19, 0
    %p62 = por %p60, %p61
    %s64 = sadd.s32 %s63, 1
    %p67 = scmp.eq.s32.totalorder %s13, 1
    %p68 = scmp.ne.s32.totalorder %s63, %s65
    %p69 = scmp.eq.s32.totalorder %s13, 0
    %p70 = por %p68, %p69
    %p71 = scmp.ne.s32.totalorder %s63, %s65
    %p72 = scmp.eq.s32.totalorder %s18, 1
    %p73 = por %p71, %p72
    %p74 = scmp.ne.s32.totalorder %s65, %s66
    %p75 = scmp.eq.s32.totalorder %s18, 0
    %p76 = por %p74, %p75
    %p77 = scmp.ne.s32.totalorder %s65, %s66
    %p78 = scmp.eq.s32.totalorder %s19, 1
    %p79 = por %p77, %p78
    %p81 = scmp.ne.s32.totalorder %s66, %s80
    %p82 = scmp.eq.s32.totalorder %s19, 0
    %p83 = por %p81, %p82
    %s85 = sadd.s32 %s84, 1
    %p88 = scmp.eq.s32.totalorder %s13, 1
    %p89 = scmp.ne.s32.totalorder %s84, %s86
    %p90 = scmp.eq.s32.totalorder %s13, 0
    %p91 = por %p89, %p90
    %p92 = scmp.ne.s32.totalorder %s84, %s86
    %p93 = scmp.eq.s32.totalorder %s18, 1
    %p94 = por %p92, %p93
    %p95 = scmp.ne.s32.totalorder %s86, %s87
    %p96 = scmp.eq.s32.totalorder %s18, 0
    %p97 = por %p95, %p96
    %p98 = scmp.ne.s32.totalorder %s86, %s87
    %p99 = scmp.eq.s32.totalorder %s19, 1
    %p100 = por %p98, %p99
    %p102 = scmp.ne.s32.totalorder %s87, %s101
    %p103 = scmp.eq.s32.totalorder %s19, 0
    %p104 = por %p102, %p103
    %s106 = sadd.s32 %s105, 1
    %p109 = scmp.eq.s32.totalorder %s13, 1
    %p110 = scmp.ne.s32.totalorder %s105, %s107
    %p111 = scmp.eq.s32.totalorder %s13, 0
    %p112 = por %p110, %p111
    %p113 = scmp.ne.s32.totalorder %s105, %s107
    %p114 = scmp.eq.s32.totalorder %s18, 1
    %p115 = por %p113, %p114
    %p116 = scmp.ne.s32.totalorder %s107, %s108
    %p117 = scmp.eq.s32.totalorder %s18, 0
    %p118 = por %p116, %p117
    %p119 = scmp.ne.s32.totalorder %s107, %s108
    %p120 = scmp.eq.s32.totalorder %s19, 1
    %p121 = por %p119, %p120
    %p123 = scmp.ne.s32.totalorder %s108, %s122
    %p124 = scmp.eq.s32.totalorder %s19, 0
    %p125 = por %p123, %p124
    %s127 = sadd.s32 %s126, 1
    %p130 = scmp.eq.s32.totalorder %s13, 1
    %p131 = scmp.ne.s32.totalorder %s126, %s128
    %p132 = scmp.eq.s32.totalorder %s13, 0
    %p133 = por %p131, %p132
    %p134 = scmp.ne.s32.totalorder %s126, %s128
    %p135 = scmp.eq.s32.totalorder %s18, 1
    %p136 = por %p134, %p135
    %p137 = scmp.ne.s32.totalorder %s128, %s129
    %p138 = scmp.eq.s32.totalorder %s18, 0
    %p139 = por %p137, %p138
    %p140 = scmp.ne.s32.totalorder %s128, %s129
    %p141 = scmp.eq.s32.totalorder %s19, 1
    %p142 = por %p140, %p141
    %p144 = scmp.ne.s32.totalorder %s129, %s143
    %p145 = scmp.eq.s32.totalorder %s19, 0
    %p146 = por %p144, %p145
    %s148 = sadd.s32 %s147, 1
    %p151 = scmp.eq.s32.totalorder %s13, 1
    %p152 = scmp.ne.s32.totalorder %s147, %s149
    %p153 = scmp.eq.s32.totalorder %s13, 0
    %p154 = por %p152, %p153
    %p155 = scmp.ne.s32.totalorder %s147, %s149
    %p156 = scmp.eq.s32.totalorder %s18, 1
    %p157 = por %p155, %p156
    %p158 = scmp.ne.s32.totalorder %s149, %s150
    %p159 = scmp.eq.s32.totalorder %s18, 0
    %p160 = por %p158, %p159
    %p161 = scmp.ne.s32.totalorder %s149, %s150
    %p162 = scmp.eq.s32.totalorder %s19, 1
    %p163 = por %p161, %p162
    %p165 = scmp.ne.s32.totalorder %s150, %s164
    %p166 = scmp.eq.s32.totalorder %s19, 0
    %p167 = por %p165, %p166
    %s169 = sadd.s32 %s168, 1
    %p172 = scmp.eq.s32.totalorder %s13, 1
    %p173 = scmp.ne.s32.totalorder %s168, %s170
    %p174 = scmp.eq.s32.totalorder %s13, 0
    %p175 = por %p173, %p174
    %p176 = scmp.ne.s32.totalorder %s168, %s170
    %p177 = scmp.eq.s32.totalorder %s18, 1
    %p178 = por %p176, %p177
    %p179 = scmp.ne.s32.totalorder %s170, %s171
    %p180 = scmp.eq.s32.totalorder %s18, 0
    %p181 = por %p179, %p180
    %p182 = scmp.ne.s32.totalorder %s170, %s171
    %p183 = scmp.eq.s32.totalorder %s19, 1
    %p184 = por %p182, %p183
    %p186 = scmp.ne.s32.totalorder %s171, %s185
    %p187 = scmp.eq.s32.totalorder %s19, 0
    %p188 = por %p186, %p187
    %s189 = smul.u32 %s21, %s20
    %s190 = smul.u32 %s28, %s32
    %s191 = ssub.s32 %s189, %s190
    %p192 = scmp.eq.s32.totalorder %s191, 0
    %s194 = sadd.s32 %s193, 1
    %s195 = scalar_select %p192, %s193, %s194
    %p198 = pneg %p192
    %p199 = scmp.eq.s32.totalorder %s13, 1
    %p200 = por %p198, %p199
    %p201 = scmp.ne.s32.totalorder %s193, %s196
    %p202 = scmp.eq.s32.totalorder %s13, 0
    %p203 = por %p201, %p202
    %p204 = scmp.ne.s32.totalorder %s193, %s196
    %p205 = scmp.eq.s32.totalorder %s18, 1
    %p206 = por %p204, %p205
    %p207 = scmp.ne.s32.totalorder %s196, %s197
    %p208 = scmp.eq.s32.totalorder %s18, 0
    %p209 = por %p207, %p208
    %p210 = scmp.ne.s32.totalorder %s196, %s197
    %p211 = scmp.eq.s32.totalorder %s19, 1
    %p212 = por %p210, %p211
    %p214 = scmp.ne.s32.totalorder %s197, %s213
    %p215 = scmp.eq.s32.totalorder %s19, 0
    %p216 = por %p214, %p215
    %p217 = scmp.le.s32.totalorder 1, %s13
    %p218 = scmp.lt.s32.totalorder %s13, 3
    %p219 = pnand %p217, %p218
    %p220 = pneg %p219
    // Predicated region
    $region9: #{policy_head.1} parent=5 // pred_check
      _
    $region10: #{policy_head.1} parent=5 // pred_check_branch
      %222 = sbr.rel (%p219) target = $region12
    $region11: #{policy_head.1} parent=5 // pred_region
      %s223 = ssub.s32 %s13, 1
      // Predicated region
      $region13: #{policy_head.1} parent=11 // pred_check
        %p224 = pneg %p76
      $region14: #{policy_head.1} parent=11 // pred_check_branch
        %226 = sbr.rel (%p224) target = $region16
      $region15: #{policy_head.1} parent=11 // pred_region
        _
      $region16: #{policy_head.1} parent=11 // pred_fallthru
        _
      // Predicated region
      $region17: #{policy_head.1} parent=11 // pred_check
        %p227 = pneg %p97
      $region18: #{policy_head.1} parent=11 // pred_check_branch
        %229 = sbr.rel (%p227) target = $region20
      $region19: #{policy_head.1} parent=11 // pred_region
        _
      $region20: #{policy_head.1} parent=11 // pred_fallthru
        _
      // Predicated region
      $region21: #{policy_head.1} parent=11 // pred_check
        %p230 = pneg %p118
      $region22: #{policy_head.1} parent=11 // pred_check_branch
        %232 = sbr.rel (%p230) target = $region24
      $region23: #{policy_head.1} parent=11 // pred_region
        _
      $region24: #{policy_head.1} parent=11 // pred_fallthru
        _
      // Predicated region
      $region25: #{policy_head.1} parent=11 // pred_check
        %p233 = pneg %p139
      $region26: #{policy_head.1} parent=11 // pred_check_branch
        %235 = sbr.rel (%p233) target = $region28
      $region27: #{policy_head.1} parent=11 // pred_region
        _
      $region28: #{policy_head.1} parent=11 // pred_fallthru
        _
      // Predicated region
      $region29: #{policy_head.1} parent=11 // pred_check
        %p236 = pneg %p160
      $region30: #{policy_head.1} parent=11 // pred_check_branch
        %238 = sbr.rel (%p236) target = $region32
      $region31: #{policy_head.1} parent=11 // pred_region
        _
      $region32: #{policy_head.1} parent=11 // pred_fallthru
        _
      // Predicated region
      $region33: #{policy_head.1} parent=11 // pred_check
        %p239 = pneg %p181
      $region34: #{policy_head.1} parent=11 // pred_check_branch
        %241 = sbr.rel (%p239) target = $region36
      $region35: #{policy_head.1} parent=11 // pred_region
        _
      $region36: #{policy_head.1} parent=11 // pred_fallthru
        _
    $region12: #{policy_head.1} parent=5 // pred_fallthru
      _
    %p242 = scmp.lt.s32.totalorder %s13, 2
    // Predicated region
    $region37: #{policy_head.1} parent=5 // pred_check
      %p243 = pneg %p242
    $region38: #{policy_head.1} parent=5 // pred_check_branch
      %245 = sbr.rel (%p243) target = $region40
    $region39: #{policy_head.1} parent=5 // pred_region
      // Predicated region
      $region41: #{policy_head.1} parent=39 // pred_check
        %p246 = pneg %p49
      $region42: #{policy_head.1} parent=39 // pred_check_branch
        %248 = sbr.rel (%p246) target = $region44
      $region43: #{policy_head.1} parent=39 // pred_region
        %s249 = ssub.s32 1, %s20
        %s250 = smul.u32 %s21, %s249
        %p251 = scmp.lt.s32.totalorder %s250, 0
        %s252 = scalar_select %p251, %s250, 0
        %s253 = smul.addr %s252, 2
        %s254 = smul.addr %s253, 4
        %s255 = scalar_lea.vmem %s0, %s254
        %s256 = ssub.s32 1, %s20
        %s257 = smul.u32 %s21, %s256
      $region44: #{policy_head.1} parent=39 // pred_fallthru
        _
    $region40: #{policy_head.1} parent=5 // pred_fallthru
      _
    %p258 = scmp.le.s32.totalorder 1, %s13
    %p259 = scmp.lt.s32.totalorder %s13, 3
    %p260 = pnand %p258, %p259
    %p261 = pneg %p260
    // Predicated region
    $region45: #{policy_head.1} parent=5 // pred_check
      _
    $region46: #{policy_head.1} parent=5 // pred_check_branch
      %263 = sbr.rel (%p260) target = $region48
    $region47: #{policy_head.1} parent=5 // pred_region
      %s264 = ssub.s32 %s13, 1
      %s265 = ssub.s32 1, %s22
      %s266 = smul.u32 %s23, %s265
      %p267 = scmp.lt.s32.totalorder %s266, 0
      %s268 = scalar_select %p267, %s266, 0
      %s269 = smul.addr %s268, 2
      %s270 = smul.addr %s269, 4
      %s271 = scalar_lea.vmem %s0, %s270
      %p272 = pneg %p55
      %p273 = pneg %p52
      %p274 = pneg %p76
      %p275 = pneg %p73
      %p276 = pneg %p97
      %p277 = pneg %p94
      %p278 = pneg %p118
      %p279 = pneg %p115
      %p280 = pneg %p139
      %p281 = pneg %p136
      %p282 = pneg %p160
      %p283 = pneg %p157
      %p284 = pneg %p181
      %p285 = pneg %p178
      %p286 = pneg %p209
      %p287 = pneg %p206
      %s288 = smul.u32 %s23, %s22
      %p289 = scmp.lt.s32.totalorder %s288, 0
      %s290 = scalar_select %p289, %s288, 0
      %s291 = smul.addr %s290, 8
      %s292 = scalar_lea.vmem %s7, %s291
      %s293 = ssub.s32 1, %s22
      %s294 = smul.u32 %s23, %s293
      %p295 = scmp.lt.s32.totalorder %s294, 0
      %s296 = scalar_select %p295, %s294, 0
      %s297 = smul.addr %s296, 2
      %s298 = smul.addr %s297, 4
      %s299 = scalar_lea.vmem %s0, %s298
      %s300 = ssub.s32 1, %s22
      %s301 = smul.u32 %s23, %s300
      %s302 = smul.u32 %s23, %s22
      %p303 = scmp.lt.s32.totalorder %s302, 0
      %s304 = scalar_select %p303, %s302, 0
      %s305 = smul.addr %s304, 8
      %s306 = scalar_lea.vmem %s7, %s305
      %s307 = smul.u32 %s23, %s22
      %s309 = smul.u32 %s23, 8
      %p310 = scmp.eq.s32.totalorder %s22, 0
      // Predicated region
      $region49: #{policy_head.1} parent=47 // pred_check
        %p311 = pneg %p310
      $region50: #{policy_head.1} parent=47 // pred_check_branch
        %313 = sbr.rel (%p311) target = $region52
      $region51: #{policy_head.1} parent=47 // pred_region
        %p314 = scmp.eq.s32.totalorder %s23, 0
        // Predicated region
        $region53: #{policy_head.1} parent=51 // pred_check
          %p315 = pneg %p314
        $region54: #{policy_head.1} parent=51 // pred_check_branch
          %317 = sbr.rel (%p315) target = $region56
        $region55: #{policy_head.1} parent=51 // pred_region
          %vm318 = vcmask 146432
          %319 = vst.msk [vmem:[#allocation3] sm:$0xff] %vm318, 0.0
        $region56: #{policy_head.1} parent=51 // pred_fallthru
          _
        %v320 = vld [vmem:[%s299] sm:$0xff]
        %v321 = vld [vmem:[%s1] sm:$0xf]
        %v322 = vld [vmem:[%s1 + $0x4] sm:$0xf]
        %v323 = vld [vmem:[%s1 + $0x8] sm:$0xf]
        %v324 = vld [vmem:[%s1 + $0xc] sm:$0xf]
        %v325 = vld [vmem:[%s1 + $0x10] sm:$0xf]
        %v326 = vld [vmem:[%s1 + $0x14] sm:$0xf]
        %v327 = vld [vmem:[%s1 + $0x18] sm:$0xf]
        %v328 = vld [vmem:[%s1 + $0x1c] sm:$0xf]
        %v329 = vld [vmem:[%s1 + $0x20] sm:$0xf]
        %v330 = vld [vmem:[%s1 + $0x24] sm:$0xf]
        %v331 = vld [vmem:[%s1 + $0x28] sm:$0xf]
        %v332 = vld [vmem:[%s1 + $0x2c] sm:$0xf]
        %v333 = vld [vmem:[%s1 + $0x30] sm:$0xf]
        %v334 = vld [vmem:[%s1 + $0x34] sm:$0xf]
        %v335 = vld [vmem:[%s1 + $0x38] sm:$0xf]
        %v336 = vld [vmem:[%s1 + $0x3c] sm:$0xf]
        %v337 = vld [vmem:[%s1 + $0x40] sm:$0xf]
        %v338 = vld [vmem:[%s1 + $0x44] sm:$0xf]
        %v340 = vunpack.c.l.b16 %v320
        %v341 = vunpack.c.h.b16 %v320
        %v342 = vpack.c.b16 %v340, %v340
        %v343 = vpack.c.b16 %v341, %v341
        %v363 = vunpack.c.l.b16 %v321
        %v364 = vunpack.c.l.b16 %v322
        %v365 = vunpack.c.l.b16 %v323
        %v366 = vunpack.c.l.b16 %v324
        %v367 = vunpack.c.l.b16 %v325
        %v368 = vunpack.c.l.b16 %v326
        %v369 = vunpack.c.l.b16 %v327
        %v370 = vunpack.c.l.b16 %v328
        %v371 = vunpack.c.l.b16 %v329
        %v372 = vunpack.c.l.b16 %v330
        %v373 = vunpack.c.l.b16 %v331
        %v374 = vunpack.c.l.b16 %v332
        %v375 = vunpack.c.l.b16 %v333
        %v376 = vunpack.c.l.b16 %v334
        %v377 = vunpack.c.l.b16 %v335
        %v378 = vunpack.c.l.b16 %v336
        %v379 = vunpack.c.l.b16 %v337
        %v380 = vunpack.c.l.b16 %v338
        %v381 = vpack.c.b16 %v364, %v363
        %v382 = vpack.c.b16 %v366, %v365
        %v383 = vpack.c.b16 %v368, %v367
        %v384 = vpack.c.b16 %v370, %v369
        %v385 = vpack.c.b16 %v372, %v371
        %v386 = vpack.c.b16 %v374, %v373
        %v387 = vpack.c.b16 %v376, %v375
        %v388 = vpack.c.b16 %v378, %v377
        %v389 = vpack.c.b16 %v380, %v379
        %vm399 = vcmask 130048
        %v401 = vsel %vm399, %v343, 0
        %403 = vmatprep.subr.bf16.mxu0 0
        %404 = vmatpush1.bf16.msra.mxu0 %v381
        %405 = vmatprep.subr.bf16.mxu0 0
        %406 = vmatpush1.bf16.msra.mxu0 %v382
        %407 = vmatprep.subr.bf16.mxu0 0
        %408 = vmatpush1.bf16.msra.mxu0 %v383
        %409 = vmatprep.subr.bf16.mxu0 0
        %410 = vmatpush1.bf16.msra.mxu0 %v384
        %411 = vmatprep.subr.bf16.mxu0 0
        %412 = vmatpush1.bf16.msra.mxu0 %v385
        %413 = vmatprep.subr.bf16.mxu0 0
        %414 = vmatpush1.bf16.msra.mxu0 %v386
        %415 = vmatprep.subr.bf16.mxu0 0
        %416 = vmatpush1.bf16.msra.mxu0 %v387
        %417 = vmatprep.subr.bf16.mxu0 0
        %418 = vmatpush1.bf16.msra.mxu0 %v388
        %419 = vmatprep.subr.bf16.mxu0 0
        %420 = vmatpush1.bf16.msra.mxu0 %v389
        %421 = vmatprep.subr.bf16.mxu0 0
        %422 = vmatpush1.bf16.msra.mxu0 0
        %423 = vmatprep.subr.bf16.mxu0 0
        %424 = vmatpush1.bf16.msra.mxu0 0
        %425 = vmatprep.subr.bf16.mxu0 0
        %426 = vmatpush1.bf16.msra.mxu0 0
        %427 = vmatprep.subr.bf16.mxu0 0
        %428 = vmatpush1.bf16.msra.mxu0 0
        %429 = vmatprep.subr.bf16.mxu0 0
        %430 = vmatpush1.bf16.msra.mxu0 0
        %431 = vmatprep.subr.bf16.mxu0 0
        %432 = vmatpush1.bf16.msra.mxu0 0
        %433 = vmatprep.subr.bf16.mxu0 0
        %434 = vmatpush1.bf16.msra.mxu0 0
        %435 = vmatprep.mubr.bf16.mxu0 %v401
        %436 = vmatmul.mubr.bf16.gmra.mrb[0].mxu0 %v342
        %v437 = vpop.f32.mrb[0].mxu0
        %v438 = vadd.f32 0.0, %v437
        %v439 = vpop.f32.mrb[0].mxu0
        %v440 = vpop.f32.mrb[0].mxu0
        %v441 = vpop.f32.mrb[0].mxu0
        %442 = vdwg.mxu0
        %s443 = scalar_lea.vmem [#allocation2], %s309
        %vm444 = vcmask 146432
        %445 = vst.msk [vmem:[%s443] sm:$0xff] %vm444, %v438
        %v446 = vld [vmem:[#allocation3] sm:$0x1]
        %v447 = vsel %vm444, %v438, 0.0
        %v448 = vrot.slane %v447, 4
        %v449 = vadd.f32 %v447, %v448
        %v450 = vrot.slane %v449, 2
        %v451 = vadd.f32 %v449, %v450
        %v452 = vrot.slane %v451, 1
        %v453 = vadd.f32 %v451, %v452
        %v454 = vadd.f32 %v446, %v453
        %vm455 = vcmask 139264
        %456 = vst.msk [vmem:[#allocation3] sm:$0x1] %vm455, %v454
        %v457 = vld [vmem:[#allocation3 + $0x1] sm:$0x1]
        %v458 = vmul.f32 %v438, %v438
        %v459 = vsel %vm444, %v458, 0.0
        %v460 = vrot.slane %v459, 4
        %v461 = vadd.f32 %v459, %v460
        %v462 = vrot.slane %v461, 2
        %v463 = vadd.f32 %v461, %v462
        %v464 = vrot.slane %v463, 1
        %v465 = vadd.f32 %v463, %v464
        %v466 = vadd.f32 %v457, %v465
        %467 = vst.msk [vmem:[#allocation3 + $0x1] sm:$0x1] %vm455, %v466
      $region52: #{policy_head.1} parent=47 // pred_fallthru
        _
      %p468 = scmp.eq.s32.totalorder %s22, 1
      // Predicated region
      $region57: #{policy_head.1} parent=47 // pred_check
        %p469 = pneg %p468
      $region58: #{policy_head.1} parent=47 // pred_check_branch
        %471 = sbr.rel (%p469) target = $region60
      $region59: #{policy_head.1} parent=47 // pred_region
        %p472 = scmp.eq.s32.totalorder %s23, 0
        // Predicated region
        $region61: #{policy_head.1} parent=59 // pred_check
          %p473 = pneg %p472
        $region62: #{policy_head.1} parent=59 // pred_check_branch
          %475 = sbr.rel (%p473) target = $region64
        $region63: #{policy_head.1} parent=59 // pred_region
          %v476 = vld [vmem:[#allocation3] sm:$0xff]
          %v477 = vld [vmem:[%s2] sm:$0xff]
          %v478 = vld [vmem:[%s2 + $0x8] sm:$0xff]
          %v479 = vld [vmem:[%s2 + $0x10] sm:$0x3]
          %vm480 = vcmask 146432
          %v482 = vsel %vm480, %v476, 0
          %vm484 = vcmask 1041408
          %v486 = vsel %vm484, %v479, 0
          %488 = vmatprep.subr.mxu0 0.0
          %489 = vmatpush1.msra.mxu0 %v477
          %490 = vmatprep.subr.mxu0 0.0
          %491 = vmatpush1.msra.mxu0 %v478
          %492 = vmatprep.subr.mxu0 0.0
          %493 = vmatpush1.msra.mxu0 %v486
          %494 = vmatprep.subr.mxu0 0.0
          %495 = vmatpush1.msra.mxu0 0.0
          %496 = vmatprep.subr.mxu0 0.0
          %497 = vmatpush1.msra.mxu0 0.0
          %498 = vmatprep.subr.mxu0 0.0
          %499 = vmatpush1.msra.mxu0 0.0
          %500 = vmatprep.subr.mxu0 0.0
          %501 = vmatpush1.msra.mxu0 0.0
          %502 = vmatprep.subr.mxu0 0.0
          %503 = vmatpush1.msra.mxu0 0.0
          %504 = vmatprep.subr.mxu0 0.0
          %505 = vmatpush1.msra.mxu0 0.0
          %506 = vmatprep.subr.mxu0 0.0
          %507 = vmatpush1.msra.mxu0 0.0
          %508 = vmatprep.subr.mxu0 0.0
          %509 = vmatpush1.msra.mxu0 0.0
          %510 = vmatprep.subr.mxu0 0.0
          %511 = vmatpush1.msra.mxu0 0.0
          %512 = vmatprep.subr.mxu0 0.0
          %513 = vmatpush1.msra.mxu0 0.0
          %514 = vmatprep.subr.mxu0 0.0
          %515 = vmatpush1.msra.mxu0 0.0
          %516 = vmatprep.subr.mxu0 0.0
          %517 = vmatpush1.msra.mxu0 0.0
          %518 = vmatprep.subr.mxu0 0.0
          %519 = vmatpush1.msra.mxu0 0.0
          %520 = vmatprep.subr.mxu0 0.0
          %521 = vmatpush1.msra.mxu0 0.0
          %522 = vmatprep.subr.mxu0 0.0
          %523 = vmatpush1.msra.mxu0 0.0
          %524 = vmatprep.subr.mxu0 0.0
          %525 = vmatpush1.msra.mxu0 0.0
          %526 = vmatprep.subr.mxu0 0.0
          %527 = vmatpush1.msra.mxu0 0.0
          %528 = vmatprep.subr.mxu0 0.0
          %529 = vmatpush1.msra.mxu0 0.0
          %530 = vmatprep.subr.mxu0 0.0
          %531 = vmatpush1.msra.mxu0 0.0
          %532 = vmatprep.subr.mxu0 0.0
          %533 = vmatpush1.msra.mxu0 0.0
          %534 = vmatprep.subr.mxu0 0.0
          %535 = vmatpush1.msra.mxu0 0.0
          %536 = vmatprep.subr.mxu0 0.0
          %537 = vmatpush1.msra.mxu0 0.0
          %538 = vmatprep.subr.mxu0 0.0
          %539 = vmatpush1.msra.mxu0 0.0
          %540 = vmatprep.subr.mxu0 0.0
          %541 = vmatpush1.msra.mxu0 0.0
          %542 = vmatprep.subr.mxu0 0.0
          %543 = vmatpush1.msra.mxu0 0.0
          %544 = vmatprep.subr.mxu0 0.0
          %545 = vmatpush1.msra.mxu0 0.0
          %546 = vmatprep.subr.mxu0 0.0
          %547 = vmatpush1.msra.mxu0 0.0
          %548 = vmatprep.subr.mxu0 0.0
          %549 = vmatpush1.msra.mxu0 0.0
          %550 = vmatprep.subr.mxu0 0.0
          %551 = vmatpush1.msra.mxu0 0.0
          %552 = vmatprep.mubr.f32.mxu0 0.0
          %553 = vmatmul.mubr.f32.gmra.mrb[0].mxu0 %v482
          %v554 = vpop.f32.mrb[0].mxu0
          %v555 = vadd.f32 0.0, %v554
          %v556 = vpop.f32.mrb[0].mxu0
          %557 = vdwg.mxu0
          %v558 = vmul.f32 %v555, 0.055555556
          %v559 = vmul.f32 %v558, %v558
          %v561 = vrot.slane %v559, 7
          %v563 = vsub.f32 %v558, %v561
          %v564 = vmax.f32 %v563, 0.0
          %v565 = vld [vmem:[%s3] sm:$0x1]
          %v566 = vadd.f32 %v564, 1e-05
          %v567 = vrsqrt.pop %v566
          %v570 = vunpack.c.l.s4 1966171168
          %v571 = vunpack.c.0.s8 %v570
          %v572 = vlaneseq
          %v573 = vshrl.u32 %v572, 7
          %v574 = vsub.s32 %v571, %v573
          %v575 = vrot.slane %v567, %v574
          %v576 = vcombine.high %v575, %v575
          %v578 = vunpack.c.l.s4 1966171168
          %v579 = vunpack.c.0.s8 %v578
          %v580 = vlaneseq
          %v581 = vshrl.u32 %v580, 7
          %v582 = vsub.s32 %v579, %v581
          %v583 = vrot.slane %v576, %v582
          %v585 = vmul.f32 %v565, %v583
          %v586 = vld [vmem:[%s4] sm:$0x1]
          %v587 = vmul.f32 %v558, %v585
          %v588 = vsub.f32 %v586, %v587
          %vm589 = vcmask 139264
          %590 = vst.msk [vmem:[#allocation4] sm:$0x1] %vm589, %v585
          %591 = vst.msk [vmem:[#allocation4 + $0x1] sm:$0x1] %vm589, %v588
        $region64: #{policy_head.1} parent=59 // pred_fallthru
          _
        %s592 = scalar_lea.vmem [#allocation2], %s309
        %v593 = vld [vmem:[%s592] sm:$0xff]
        %v594 = vld [vmem:[#allocation4] sm:$0x1]
        %v595 = vlaneseq
        %v596 = vshrl.u32 %v595, 7
        %v597 = vsub.s32 0, %v596
        %v598 = vrot.slane %v594, %v597
        %v599 = vmul.f32 %v593, %v598
        %v600 = vld [vmem:[#allocation4 + $0x1] sm:$0x1]
        %v601 = vlaneseq
        %v602 = vshrl.u32 %v601, 7
        %v603 = vsub.s32 0, %v602
        %v604 = vrot.slane %v600, %v603
        %v605 = vadd.f32 %v599, %v604
        %v606 = vmax.f32 %v605, 0.0
        %v607 = vpack.c.bf16 %v606, %v606
        %v608 = vld [vmem:[%s5] sm:$0xf]
        %v609 = vld [vmem:[%s5 + $0x4] sm:$0xf]
        %v610 = vld [vmem:[%s5 + $0x8] sm:$0x1]
        %v611 = vld [vmem:[%s6] sm:$0x1]
        %v613 = vlaneseq
        %v614 = vshrl.u32 %v613, 7
        %v615 = vsub.s32 0, %v614
        %v616 = vrot.slane %v611, %v615
        %v621 = vunpack.c.l.b16 %v608
        %v622 = vunpack.c.l.b16 %v609
        %v623 = vunpack.c.l.b16 %v610
        %v624 = vpack.c.b16 %v622, %v621
        %v625 = vpack.c.b16 %v623, %v623
        %vm627 = vcmask 146432
        %v629 = vsel %vm627, %v607, 0
        %vm631 = vcmask 1040384
        %v633 = vsel %vm631, %v625, 0
        %635 = vmatprep.subr.bf16.mxu0 0
        %636 = vmatpush1.bf16.msra.mxu0 %v624
        %637 = vmatprep.subr.bf16.mxu0 0
        %638 = vmatpush1.bf16.msra.mxu0 %v633
        %639 = vmatprep.subr.bf16.mxu0 0
        %640 = vmatpush1.bf16.msra.mxu0 0
        %641 = vmatprep.subr.bf16.mxu0 0
        %642 = vmatpush1.bf16.msra.mxu0 0
        %643 = vmatprep.subr.bf16.mxu0 0
        %644 = vmatpush1.bf16.msra.mxu0 0
        %645 = vmatprep.subr.bf16.mxu0 0
        %646 = vmatpush1.bf16.msra.mxu0 0
        %647 = vmatprep.subr.bf16.mxu0 0
        %648 = vmatpush1.bf16.msra.mxu0 0
        %649 = vmatprep.subr.bf16.mxu0 0
        %650 = vmatpush1.bf16.msra.mxu0 0
        %651 = vmatprep.subr.bf16.mxu0 0
        %652 = vmatpush1.bf16.msra.mxu0 0
        %653 = vmatprep.subr.bf16.mxu0 0
        %654 = vmatpush1.bf16.msra.mxu0 0
        %655 = vmatprep.subr.bf16.mxu0 0
        %656 = vmatpush1.bf16.msra.mxu0 0
        %657 = vmatprep.subr.bf16.mxu0 0
        %658 = vmatpush1.bf16.msra.mxu0 0
        %659 = vmatprep.subr.bf16.mxu0 0
        %660 = vmatpush1.bf16.msra.mxu0 0
        %661 = vmatprep.subr.bf16.mxu0 0
        %662 = vmatpush1.bf16.msra.mxu0 0
        %663 = vmatprep.subr.bf16.mxu0 0
        %664 = vmatpush1.bf16.msra.mxu0 0
        %665 = vmatprep.subr.bf16.mxu0 0
        %666 = vmatpush1.bf16.msra.mxu0 0
        %667 = vmatprep.mubr.bf16.mxu0 0
        %668 = vmatmul.mubr.bf16.gmra.mrb[0].mxu0 %v629
        %v669 = vpop.f32.mrb[0].mxu0
        %v670 = vadd.f32 %v616, %v669
        %v671 = vpop.f32.mrb[0].mxu0
        %v672 = vpop.f32.mrb[0].mxu0
        %v673 = vpop.f32.mrb[0].mxu0
        %674 = vdwg.mxu0
        %vm675 = vcmask 31744
        %676 = vst.msk [vmem:[%s306] sm:$0xff] %vm675, %v670
      $region60: #{policy_head.1} parent=47 // pred_fallthru
        _
      %s677 = smul.u32 %s23, %s22
      %p678 = scmp.lt.s32.totalorder %s677, 0
      %s679 = scalar_select %p678, %s677, 0
      %s680 = smul.addr %s679, 8
      %s681 = scalar_lea.vmem %s7, %s680
      // Predicated region
      $region65: #{policy_head.1} parent=47 // pred_check
        %p682 = pneg %p206
      $region66: #{policy_head.1} parent=47 // pred_check_branch
        %684 = sbr.rel (%p682) target = $region68
      $region67: #{policy_head.1} parent=47 // pred_region
        %s685 = smul.u32 %s23, %s22
      $region68: #{policy_head.1} parent=47 // pred_fallthru
        _
    $region48: #{policy_head.1} parent=5 // pred_fallthru
      _
    %p686 = scmp.le.s32.totalorder 2, %s13
    // Predicated region
    $region69: #{policy_head.1} parent=5 // pred_check
      %p687 = pneg %p686
    $region70: #{policy_head.1} parent=5 // pred_check_branch
      %689 = sbr.rel (%p687) target = $region72
    $region71: #{policy_head.1} parent=5 // pred_region
      %s690 = ssub.s32 %s13, 2
      // Predicated region
      $region73: #{policy_head.1} parent=71 // pred_check
        %p691 = pneg %p212
      $region74: #{policy_head.1} parent=71 // pred_check_branch
        %693 = sbr.rel (%p691) target = $region76
      $region75: #{policy_head.1} parent=71 // pred_region
        %s694 = smul.u32 %s25, %s24
        %p695 = scmp.lt.s32.totalorder %s694, 0
        %s696 = scalar_select %p695, %s694, 0
        %s697 = smul.addr %s696, 8
        %s698 = scalar_lea.vmem %s7, %s697
      $region76: #{policy_head.1} parent=71 // pred_fallthru
        _
    $region72: #{policy_head.1} parent=5 // pred_fallthru
      _
  $region6: #{policy_head.1} parent=0 // loop_footer
    %s17 = sadd.s32 1, %s13
  $region7: #{policy_head.1} parent=0 // loop_footer_branch
    %12 = sbr.rel target = $region3
  $region8: #{policy_head.1} parent=0 // loop_exit
    _

</llo_original>
